<compile_context>
chip_gen: v6e
topology: v6e:2x2x1
jax: 0.10.0
libtpu: 0.0.40
codegen_flags: <defaults>
</compile_context>

<pallas_src>
import functools

import jax
import jax.numpy as jnp
from jax.experimental import pallas as pl
from jax.experimental.pallas import tpu as pltpu


def _round_up(x, m):
    return (x + m - 1) // m * m


def _vmem_budget_bytes():
    """Per-kernel VMEM budget with headroom for compiler scratch.

    v7x only has 64 MiB/TC, so never claim all of it (~54 MiB); on
    v5e/v6e (128 MiB physical) raise the limit toward ~100-110 MiB when the
    hardware query is available.  Falls back to a cross-generation-safe
    48 MiB if the query fails.
    """
    try:
        cap = getattr(pltpu.get_tpu_info(), "vmem_capacity_bytes", None)
    except Exception:  # pragma: no cover - query unavailable
        cap = None
    if not cap:
        return 48 * 1024 * 1024
    return min(int(cap * 0.85), 110 * 1024 * 1024)


def _resident_spec(shape):
    """Constant-index block: single-buffer it (its block index never changes)."""
    try:
        return pl.BlockSpec(shape, lambda i, n: (0, 0), pipeline_mode=pl.Buffered(1))
    except TypeError:  # older jax without pipeline_mode kwarg
        return pl.BlockSpec(shape, lambda i, n: (0, 0))


def dae_kernel(x_ref, w1_ref, b1_ref, w2_ref, b2_ref, o_ref, h_ref):
    # Encoder: runs once per batch tile (at the first decoder-N step); the
    # ReLU'd hidden activation is cached in VMEM scratch and reused for the
    # remaining decoder-output tiles of this batch tile.
    @pl.when(pl.program_id(1) == 0)
    def _():
        h = jnp.dot(x_ref[...], w1_ref[...], preferred_element_type=jnp.float32)
        h = jnp.maximum(h + b1_ref[...], 0.0)        # bias add + ReLU in f32
        h_ref[...] = h.astype(h_ref.dtype)           # cache as bf16 for the MXU

    # Decoder: one lane-dense N tile of the output per grid step.
    y = jnp.dot(h_ref[...], w2_ref[...], preferred_element_type=jnp.float32)
    y = y + b2_ref[...]                              # bias add in f32
    # sigmoid(y) == 0.5*tanh(0.5*y)+0.5 : single EUP op per element.
    o_ref[...] = (0.5 * jnp.tanh(0.5 * y) + 0.5).astype(o_ref.dtype)


def prepare_params(w1, b1, w2, b2):
    """Pad feature dims to lane-dense multiples of 128 and cast weights to
    bf16 ONCE, outside the per-call forward path (weights are static for
    inference, so per-call padding would be pure wasted HBM traffic)."""
    d_in, hidden = w1.shape
    d_pad = _round_up(d_in, 128)
    h_pad = _round_up(hidden, 128)
    w1p = jnp.zeros((d_pad, h_pad), jnp.bfloat16).at[:d_in, :hidden].set(
        w1.astype(jnp.bfloat16))
    b1p = jnp.zeros((1, h_pad), jnp.float32).at[:, :hidden].set(
        b1.astype(jnp.float32).reshape(1, -1))
    w2p = jnp.zeros((h_pad, d_pad), jnp.bfloat16).at[:hidden, :d_in].set(
        w2.astype(jnp.bfloat16))
    b2p = jnp.zeros((1, d_pad), jnp.float32).at[:, :d_in].set(
        b2.astype(jnp.float32).reshape(1, -1))
    return w1p, b1p, w2p, b2p


@functools.partial(jax.jit, static_argnames=("tm", "tn"))
def denoising_autoencoder(x, w1p, b1p, w2p, b2p, *, tm=512, tn=512):
    """x: [B, D_in] (unpadded); w1p/b1p/w2p/b2p from prepare_params.

    Returns sigmoid(relu(x @ w1 + b1) @ w2 + b2) with shape [B, D_in], dtype of x.
    """
    B, D_in = x.shape
    d_pad = w2p.shape[1]
    h_pad = w1p.shape[1]
    out_dtype = x.dtype
    out_bytes = jnp.dtype(out_dtype).itemsize

    budget = _vmem_budget_bytes()

    # ---- tile selection --------------------------------------------------
    # tn: lane-dense divisor of d_pad (d_pad is a multiple of 128).
    tn = max(128, min(_round_up(tn, 128), d_pad))
    while d_pad % tn:
        tn -= 128

    # tm: w2/b2 are re-streamed from HBM once per batch tile, so decoder
    # arithmetic intensity w.r.t. w2 bytes is ~tm flop/byte -> make tm as
    # large as the batch and the VMEM budget allow.  Keep it a multiple of 16
    # (bf16 sublane packing).
    tm = max(16, min(_round_up(tm, 16), _round_up(B, 16)))

    def vmem_bytes(tm_):
        return (d_pad * h_pad * 2            # w1 (bf16, single-buffered)
                + h_pad * 4                  # b1 (f32, single-buffered)
                + 2 * tm_ * d_pad * 2        # x tile (bf16, double-buffered)
                + 2 * h_pad * tn * 2         # w2 tile (bf16, double-buffered)
                + 2 * tn * 4                 # b2 tile (f32, double-buffered)
                + 2 * tm_ * tn * out_bytes   # out tile (double-buffered)
                + tm_ * h_pad * 2)           # cached hidden scratch (bf16)

    while tm > 16 and vmem_bytes(tm) > budget:
        tm = max(16, _round_up(tm // 2, 16))

    # Megacore (v7x): make sure there are >=2 batch tiles when B allows, so
    # both TensorCores get work under dimension_semantics=("parallel", ...).
    if _round_up(B, 16) <= tm and B > 16:
        tm = max(16, _round_up(-(-B // 2), 16))

    b_pad = _round_up(B, tm)
    grid = (b_pad // tm, d_pad // tn)
    n_batch_tiles = grid[0]

    # Only x padding/cast stays in the per-call path.
    xp = jnp.zeros((b_pad, d_pad), jnp.bfloat16).at[:B, :D_in].set(
        x.astype(jnp.bfloat16))

    # Accurate scheduling hint: w2/b2 are re-read once per batch tile; the
    # sigmoid costs ~2 transcendental-class ops per output element.
    cost = pl.CostEstimate(
        flops=4 * b_pad * d_pad * h_pad,                     # two matmuls
        transcendentals=2 * b_pad * d_pad,                   # sigmoid epilogue
        bytes_accessed=(xp.size * 2
                        + w1p.size * 2 + b1p.size * 4        # resident, read once
                        + n_batch_tiles * (w2p.size * 2 + b2p.size * 4)
                        + b_pad * d_pad * out_bytes),
    )

    # NOTE: for very large D_in on v7x, add a K grid axis over d_pad for the
    # encoder (accumulate into h_ref with pl.when init/finalize) instead of
    # keeping the whole w1 block resident; not needed at these shapes.
    out = pl.pallas_call(
        dae_kernel,
        out_shape=jax.ShapeDtypeStruct((b_pad, d_pad), out_dtype),
        grid_spec=pltpu.PrefetchScalarGridSpec(
            num_scalar_prefetch=0,
            grid=grid,
            in_specs=[
                pl.BlockSpec((tm, d_pad), lambda i, n: (i, 0)),   # x batch tile
                _resident_spec((d_pad, h_pad)),                   # w1 (resident, 1-buf)
                _resident_spec((1, h_pad)),                       # b1 (resident, 1-buf)
                pl.BlockSpec((h_pad, tn), lambda i, n: (0, n)),   # w2 N tile (streamed)
                pl.BlockSpec((1, tn), lambda i, n: (0, n)),       # b2 N tile
            ],
            out_specs=pl.BlockSpec((tm, tn), lambda i, n: (i, n)),
            scratch_shapes=[pltpu.VMEM((tm, h_pad), jnp.bfloat16)],  # cached hidden
        ),
        compiler_params=pltpu.CompilerParams(
            # Batch tiles shard across TensorCores; decoder-N must stay
            # "arbitrary" (scratch h_ref is carried across it).
            dimension_semantics=("parallel", "arbitrary"),
            vmem_limit_bytes=budget,
        ),
        cost_estimate=cost,
    )(xp, w1p, b1p, w2p, b2p)

    return out[:B, :D_in]


def init_params(key, input_dim, hidden_dim):
    """Deterministic init mimicking PyTorch's default Linear init."""
    k1, k2, k3, k4 = jax.random.split(key, 4)
    bound1 = 1.0 / jnp.sqrt(input_dim)
    bound2 = 1.0 / jnp.sqrt(hidden_dim)
    # Stored already transposed: [in_features, out_features].
    w1 = jax.random.uniform(k1, (input_dim, hidden_dim), jnp.float32, -bound1, bound1)
    b1 = jax.random.uniform(k2, (1, hidden_dim), jnp.float32, -bound1, bound1)
    w2 = jax.random.uniform(k3, (hidden_dim, input_dim), jnp.float32, -bound2, bound2)
    b2 = jax.random.uniform(k4, (1, input_dim), jnp.float32, -bound2, bound2)
    return w1, b1, w2, b2


if __name__ == "__main__":
    key = jax.random.PRNGKey(0)
    batch, input_dim, hidden_dim = 256, 64, 32

    kx, kp = jax.random.split(key)
    x = jax.random.uniform(kx, (batch, input_dim), jnp.float32)  # noisy input in [0,1)
    w1, b1, w2, b2 = init_params(kp, input_dim, hidden_dim)

    # Pad + cast the static weights once, outside the jitted forward path.
    w1p, b1p, w2p, b2p = prepare_params(w1, b1, w2, b2)

    out = denoising_autoencoder(x, w1p, b1p, w2p, b2p, tm=512, tn=512)
    out = jax.block_until_ready(out)

    # Pure-JAX f32 reference (kernel runs the matmuls in bf16 with f32 accum).
    h_ref = jnp.maximum(x @ w1 + b1, 0.0)
    y_ref = jax.nn.sigmoid(h_ref @ w2 + b2)
    assert out.shape == (batch, input_dim)
    assert jnp.allclose(out, y_ref, atol=2e-2, rtol=2e-2), float(
        jnp.max(jnp.abs(out - y_ref)))

    print("KERNEL_OK")
</pallas_src>

<mosaic_0001>
module attributes {stable_mosaic.version = 11 : i64} {
  func.func @dae_kernel(%arg0: i32, %arg1: i32, %arg2: memref<128x128xbf16, #tpu.memory_space<vmem>>, %arg3: memref<128x128xbf16, #tpu.memory_space<vmem>>, %arg4: memref<1x128xf32, #tpu.memory_space<vmem>>, %arg5: memref<128x128xbf16, #tpu.memory_space<vmem>>, %arg6: memref<1x128xf32, #tpu.memory_space<vmem>>, %arg7: memref<128x128xf32, #tpu.memory_space<vmem>>, %arg8: memref<128x128xbf16, #tpu.memory_space<vmem>>) attributes {dimension_semantics = [#tpu.dimension_semantics<parallel>, #tpu.dimension_semantics<arbitrary>], iteration_bounds = array<i64: 2, 1>, scalar_prefetch = 0 : i64, scratch_operands = 1 : i64, tpu.core_type = #tpu.core_type<tc>, window_params = [{transform_indices = @transform_0, window_bounds = array<i64: 128, 128>}, {pipeline_mode = #tpu.pipeline_mode<synchronous>, transform_indices = @transform_1, window_bounds = array<i64: 128, 128>}, {pipeline_mode = #tpu.pipeline_mode<synchronous>, transform_indices = @transform_2, window_bounds = array<i64: 1, 128>}, {transform_indices = @transform_3, window_bounds = array<i64: 128, 128>}, {transform_indices = @transform_4, window_bounds = array<i64: 1, 128>}, {transform_indices = @transform_5, window_bounds = array<i64: 128, 128>}]} {
    %c0_i32 = arith.constant 0 : i32
    %0 = arith.cmpi eq, %arg1, %c0_i32 : i32
    %1 = arith.extui %0 : i1 to i32
    %c0_i32_0 = arith.constant 0 : i32
    %2 = arith.cmpi ne, %1, %c0_i32_0 : i32
    scf.if %2 {
      %c0_11 = arith.constant 0 : index
      %c0_12 = arith.constant 0 : index
      %17 = vector.load %arg2[%c0_11, %c0_12] : memref<128x128xbf16, #tpu.memory_space<vmem>>, vector<128x128xbf16>
      %c0_13 = arith.constant 0 : index
      %c0_14 = arith.constant 0 : index
      %18 = vector.load %arg3[%c0_13, %c0_14] : memref<128x128xbf16, #tpu.memory_space<vmem>>, vector<128x128xbf16>
      %cst_15 = arith.constant dense<0.000000e+00> : vector<128x128xf32>
      %19 = tpu.matmul %17, %18, %cst_15 {dimension_numbers = #tpu.dot_dimension_numbers<[1], [0], [0], [1], [0, 0, 1, 1], [], []>} : vector<128x128xbf16>, vector<128x128xbf16>, vector<128x128xf32> -> vector<128x128xf32>
      %c0_16 = arith.constant 0 : index
      %c0_17 = arith.constant 0 : index
      %20 = vector.load %arg4[%c0_16, %c0_17] : memref<1x128xf32, #tpu.memory_space<vmem>>, vector<1x128xf32>
      %21 = vector.broadcast %20 : vector<1x128xf32> to vector<128x128xf32>
      %22 = arith.addf %19, %21 : vector<128x128xf32>
      %cst_18 = arith.constant 0.000000e+00 : f32
      %23 = vector.broadcast %cst_18 : f32 to vector<128x128xf32>
      %24 = arith.maximumf %22, %23 : vector<128x128xf32>
      %25 = arith.truncf %24 : vector<128x128xf32> to vector<128x128xbf16>
      %c0_19 = arith.constant 0 : index
      %c0_20 = arith.constant 0 : index
      %26 = vector.load %arg8[%c0_19, %c0_20] : memref<128x128xbf16, #tpu.memory_space<vmem>>, vector<128x128xbf16>
      tpu.vector_store %arg8[%c0_19, %c0_20], %25 {strides = array<i32>} : memref<128x128xbf16, #tpu.memory_space<vmem>>, vector<128x128xbf16>,
    } else {
    }
    %c0 = arith.constant 0 : index
    %c0_1 = arith.constant 0 : index
    %3 = vector.load %arg8[%c0, %c0_1] : memref<128x128xbf16, #tpu.memory_space<vmem>>, vector<128x128xbf16>
    %c0_2 = arith.constant 0 : index
    %c0_3 = arith.constant 0 : index
    %4 = vector.load %arg5[%c0_2, %c0_3] : memref<128x128xbf16, #tpu.memory_space<vmem>>, vector<128x128xbf16>
    %cst = arith.constant dense<0.000000e+00> : vector<128x128xf32>
    %5 = tpu.matmul %3, %4, %cst {dimension_numbers = #tpu.dot_dimension_numbers<[1], [0], [0], [1], [0, 0, 1, 1], [], []>} : vector<128x128xbf16>, vector<128x128xbf16>, vector<128x128xf32> -> vector<128x128xf32>
    %c0_4 = arith.constant 0 : index
    %c0_5 = arith.constant 0 : index
    %6 = vector.load %arg6[%c0_4, %c0_5] : memref<1x128xf32, #tpu.memory_space<vmem>>, vector<1x128xf32>
    %7 = vector.broadcast %6 : vector<1x128xf32> to vector<128x128xf32>
    %8 = arith.addf %5, %7 : vector<128x128xf32>
    %cst_6 = arith.constant 5.000000e-01 : f32
    %9 = vector.broadcast %cst_6 : f32 to vector<128x128xf32>
    %10 = arith.mulf %9, %8 : vector<128x128xf32>
    %11 = math.tanh %10 : vector<128x128xf32>
    %cst_7 = arith.constant 5.000000e-01 : f32
    %12 = vector.broadcast %cst_7 : f32 to vector<128x128xf32>
    %13 = arith.mulf %12, %11 : vector<128x128xf32>
    %cst_8 = arith.constant 5.000000e-01 : f32
    %14 = vector.broadcast %cst_8 : f32 to vector<128x128xf32>
    %15 = arith.addf %13, %14 : vector<128x128xf32>
    %c0_9 = arith.constant 0 : index
    %c0_10 = arith.constant 0 : index
    %16 = vector.load %arg7[%c0_9, %c0_10] : memref<128x128xf32, #tpu.memory_space<vmem>>, vector<128x128xf32>
    tpu.vector_store %arg7[%c0_9, %c0_10], %15 {strides = array<i32>} : memref<128x128xf32, #tpu.memory_space<vmem>>, vector<128x128xf32>,
    return
  }
  func.func @transform_0(%arg0: i32, %arg1: i32) -> (i32, i32) {
    %c0_i32 = arith.constant 0 : i32
    %c0_i32_0 = arith.constant 0 : i32
    return %arg0, %c0_i32 : i32, i32
  }
  func.func @transform_1(%arg0: i32, %arg1: i32) -> (i32, i32) {
    %c0_i32 = arith.constant 0 : i32
    %c0_i32_0 = arith.constant 0 : i32
    %c0_i32_1 = arith.constant 0 : i32
    return %c0_i32, %c0_i32_0 : i32, i32
  }
  func.func @transform_2(%arg0: i32, %arg1: i32) -> (i32, i32) {
    %c0_i32 = arith.constant 0 : i32
    %c0_i32_0 = arith.constant 0 : i32
    %c0_i32_1 = arith.constant 0 : i32
    return %c0_i32, %c0_i32_0 : i32, i32
  }
  func.func @transform_3(%arg0: i32, %arg1: i32) -> (i32, i32) {
    %c0_i32 = arith.constant 0 : i32
    %c0_i32_0 = arith.constant 0 : i32
    return %c0_i32, %arg1 : i32, i32
  }
  func.func @transform_4(%arg0: i32, %arg1: i32) -> (i32, i32) {
    %c0_i32 = arith.constant 0 : i32
    %c0_i32_0 = arith.constant 0 : i32
    return %c0_i32, %arg1 : i32, i32
  }
  func.func @transform_5(%arg0: i32, %arg1: i32) -> (i32, i32) {
    %c0_i32 = arith.constant 0 : i32
    return %arg0, %arg1 : i32, i32
  }
}

</mosaic_0001>

<llo_original>
// kernel: denoising_autoencoder.1
$region0: #{denoising_autoencoder.1}
  #allocation0 [shape = 'u32[]', space=smem, size = 0x4, offset = 0x4, fixed_abs, tag = 'smem constant byte address 0x4 - core index']
  #allocation1 [shape = 'u32[144,128]{1,0:T(1,128)}', space=vmem, size = 0x12000, scoped, tag = 'internal scratch']
  #allocation2 [shape = 'bf16[128,128]{1,0:T(8,128)(2,1)}', space=vmem, size = 0x8000, scoped, tag = 'scratch operand']
  %s0 = inlined_call_operand.vmem [shape: bf16[256,128], index: 0, kind: input, shape index: {}]
  %s1 = inlined_call_operand.vmem [shape: bf16[128,128], index: 1, kind: input, shape index: {}]
  %s2 = inlined_call_operand.vmem [shape: f32[1,128], index: 2, kind: input, shape index: {}]
  %s3 = inlined_call_operand.vmem [shape: bf16[128,128], index: 3, kind: input, shape index: {}]
  %s4 = inlined_call_operand.vmem [shape: f32[1,128], index: 4, kind: input, shape index: {}]
  %s5 = inlined_call_operand.vmem [shape: f32[256,128], index: 5, kind: output, shape index: {}]
  %s6 = sld [smem:[#allocation0]]
  $region57: #{denoising_autoencoder.1} parent=0
    _
  %s8 = ssub.s32 1, %s6
  %s9 = scalar_select 0, %s8, %s6
  loop: start=0, step=1, limit=4
  $region2: #{denoising_autoencoder.1} parent=0 // loop_pre_header
    _
  $region3: #{denoising_autoencoder.1} parent=0 // loop_header
    %s11 = sphi 0, %s15
    %p12 = scmp.ge.s32.totalorder %s11, 4
    %s18 = sphi 0, %s30
    %s19 = sphi 0, %s26
    %s20 = sphi 0, %s18
    %s21 = sphi 0, %s19
    %s22 = sphi 0, %s20
    %s23 = sphi 0, %s21
    %s33 = sphi 0, %s35
    %s36 = sphi 0, %s33
    %s37 = sphi 0, %s36
    %s53 = sphi 0, %s37
    %s57 = sphi 0, %s57
    %s59 = sphi 0, %s57
    %s60 = sphi 0, %s59
    %s74 = sphi 0, %s60
    %s78 = sphi 0, %s78
    %s80 = sphi 0, %s78
    %s81 = sphi 0, %s80
    %s95 = sphi 0, %s81
    %s101 = sphi 0, %s103
    %s104 = sphi 0, %s101
    %s105 = sphi 0, %s104
    %s121 = sphi 0, %s105
    %s127 = sphi 0, %s129
    %s130 = sphi 0, %s127
    %s131 = sphi 0, %s130
    %s147 = sphi 0, %s131
    %s155 = sphi 0, %s157
    %s158 = sphi 0, %s155
    %s159 = sphi 0, %s158
    %s175 = sphi 0, %s159
  $region4: #{denoising_autoencoder.1} parent=0 // loop_header_branch
    %14 = sbr.rel (%p12) target = $region8
  $region5: #{denoising_autoencoder.1} parent=0 // loop_body
    %s16 = ssub.s32 %s11, 1
    %s17 = ssub.s32 %s11, 2
    %s24 = sadd.s32 1, %s19
    %p25 = scmp.ge.s32.totalorder %s24, 1
    %s26 = scalar_select %p25, 0, %s24
    %s27 = sadd.s32 1, %s18
    %s28 = scalar_select %p25, %s27, %s18
    %p29 = scmp.ge.s32.totalorder %s28, 2
    %s30 = scalar_select %p29, 0, %s28
    %s31 = ssub.s32 %s18, %s30
    %p32 = scmp.eq.s32.totalorder %s31, 0
    %s34 = sadd.s32 %s33, 1
    %s35 = scalar_select %p32, %s33, %s34
    %p38 = pneg %p32
    %p39 = scmp.eq.s32.totalorder %s11, 1
    %p40 = por %p38, %p39
    %p41 = scmp.ne.s32.totalorder %s33, %s36
    %p42 = scmp.eq.s32.totalorder %s11, 0
    %p43 = por %p41, %p42
    %p44 = scmp.ne.s32.totalorder %s33, %s36
    %p45 = scmp.eq.s32.totalorder %s16, 1
    %p46 = por %p44, %p45
    %p47 = scmp.ne.s32.totalorder %s36, %s37
    %p48 = scmp.eq.s32.totalorder %s16, 0
    %p49 = por %p47, %p48
    %p50 = scmp.ne.s32.totalorder %s36, %s37
    %p51 = scmp.eq.s32.totalorder %s17, 1
    %p52 = por %p50, %p51
    %p54 = scmp.ne.s32.totalorder %s37, %s53
    %p55 = scmp.eq.s32.totalorder %s17, 0
    %p56 = por %p54, %p55
    %s58 = sadd.s32 %s57, 1
    %p61 = scmp.eq.s32.totalorder %s11, 1
    %p62 = scmp.ne.s32.totalorder %s57, %s59
    %p63 = scmp.eq.s32.totalorder %s11, 0
    %p64 = por %p62, %p63
    %p65 = scmp.ne.s32.totalorder %s57, %s59
    %p66 = scmp.eq.s32.totalorder %s16, 1
    %p67 = por %p65, %p66
    %p68 = scmp.ne.s32.totalorder %s59, %s60
    %p69 = scmp.eq.s32.totalorder %s16, 0
    %p70 = por %p68, %p69
    %p71 = scmp.ne.s32.totalorder %s59, %s60
    %p72 = scmp.eq.s32.totalorder %s17, 1
    %p73 = por %p71, %p72
    %p75 = scmp.ne.s32.totalorder %s60, %s74
    %p76 = scmp.eq.s32.totalorder %s17, 0
    %p77 = por %p75, %p76
    %s79 = sadd.s32 %s78, 1
    %p82 = scmp.eq.s32.totalorder %s11, 1
    %p83 = scmp.ne.s32.totalorder %s78, %s80
    %p84 = scmp.eq.s32.totalorder %s11, 0
    %p85 = por %p83, %p84
    %p86 = scmp.ne.s32.totalorder %s78, %s80
    %p87 = scmp.eq.s32.totalorder %s16, 1
    %p88 = por %p86, %p87
    %p89 = scmp.ne.s32.totalorder %s80, %s81
    %p90 = scmp.eq.s32.totalorder %s16, 0
    %p91 = por %p89, %p90
    %p92 = scmp.ne.s32.totalorder %s80, %s81
    %p93 = scmp.eq.s32.totalorder %s17, 1
    %p94 = por %p92, %p93
    %p96 = scmp.ne.s32.totalorder %s81, %s95
    %p97 = scmp.eq.s32.totalorder %s17, 0
    %p98 = por %p96, %p97
    %s99 = ssub.s32 %s19, %s26
    %p100 = scmp.eq.s32.totalorder %s99, 0
    %s102 = sadd.s32 %s101, 1
    %s103 = scalar_select %p100, %s101, %s102
    %p106 = pneg %p100
    %p107 = scmp.eq.s32.totalorder %s11, 1
    %p108 = por %p106, %p107
    %p109 = scmp.ne.s32.totalorder %s101, %s104
    %p110 = scmp.eq.s32.totalorder %s11, 0
    %p111 = por %p109, %p110
    %p112 = scmp.ne.s32.totalorder %s101, %s104
    %p113 = scmp.eq.s32.totalorder %s16, 1
    %p114 = por %p112, %p113
    %p115 = scmp.ne.s32.totalorder %s104, %s105
    %p116 = scmp.eq.s32.totalorder %s16, 0
    %p117 = por %p115, %p116
    %p118 = scmp.ne.s32.totalorder %s104, %s105
    %p119 = scmp.eq.s32.totalorder %s17, 1
    %p120 = por %p118, %p119
    %p122 = scmp.ne.s32.totalorder %s105, %s121
    %p123 = scmp.eq.s32.totalorder %s17, 0
    %p124 = por %p122, %p123
    %s125 = ssub.s32 %s19, %s26
    %p126 = scmp.eq.s32.totalorder %s125, 0
    %s128 = sadd.s32 %s127, 1
    %s129 = scalar_select %p126, %s127, %s128
    %p132 = pneg %p126
    %p133 = scmp.eq.s32.totalorder %s11, 1
    %p134 = por %p132, %p133
    %p135 = scmp.ne.s32.totalorder %s127, %s130
    %p136 = scmp.eq.s32.totalorder %s11, 0
    %p137 = por %p135, %p136
    %p138 = scmp.ne.s32.totalorder %s127, %s130
    %p139 = scmp.eq.s32.totalorder %s16, 1
    %p140 = por %p138, %p139
    %p141 = scmp.ne.s32.totalorder %s130, %s131
    %p142 = scmp.eq.s32.totalorder %s16, 0
    %p143 = por %p141, %p142
    %p144 = scmp.ne.s32.totalorder %s130, %s131
    %p145 = scmp.eq.s32.totalorder %s17, 1
    %p146 = por %p144, %p145
    %p148 = scmp.ne.s32.totalorder %s131, %s147
    %p149 = scmp.eq.s32.totalorder %s17, 0
    %p150 = por %p148, %p149
    %s151 = ssub.s32 %s18, %s30
    %s152 = ssub.s32 %s19, %s26
    %s153 = sor.u32 %s151, %s152
    %p154 = scmp.eq.s32.totalorder %s153, 0
    %s156 = sadd.s32 %s155, 1
    %s157 = scalar_select %p154, %s155, %s156
    %p160 = pneg %p154
    %p161 = scmp.eq.s32.totalorder %s11, 1
    %p162 = por %p160, %p161
    %p163 = scmp.ne.s32.totalorder %s155, %s158
    %p164 = scmp.eq.s32.totalorder %s11, 0
    %p165 = por %p163, %p164
    %p166 = scmp.ne.s32.totalorder %s155, %s158
    %p167 = scmp.eq.s32.totalorder %s16, 1
    %p168 = por %p166, %p167
    %p169 = scmp.ne.s32.totalorder %s158, %s159
    %p170 = scmp.eq.s32.totalorder %s16, 0
    %p171 = por %p169, %p170
    %p172 = scmp.ne.s32.totalorder %s158, %s159
    %p173 = scmp.eq.s32.totalorder %s17, 1
    %p174 = por %p172, %p173
    %p176 = scmp.ne.s32.totalorder %s159, %s175
    %p177 = scmp.eq.s32.totalorder %s17, 0
    %p178 = por %p176, %p177
    %p179 = scmp.le.s32.totalorder 1, %s11
    %p180 = scmp.lt.s32.totalorder %s11, 3
    %p181 = pnand %p179, %p180
    %p182 = pneg %p181
    // Predicated region
    $region9: #{denoising_autoencoder.1} parent=5 // pred_check
      _
    $region10: #{denoising_autoencoder.1} parent=5 // pred_check_branch
      %184 = sbr.rel (%p181) target = $region12
    $region11: #{denoising_autoencoder.1} parent=5 // pred_region
      %s185 = ssub.s32 %s11, 1
      // Predicated region
      $region13: #{denoising_autoencoder.1} parent=11 // pred_check
        %p186 = pneg %p70
      $region14: #{denoising_autoencoder.1} parent=11 // pred_check_branch
        %188 = sbr.rel (%p186) target = $region16
      $region15: #{denoising_autoencoder.1} parent=11 // pred_region
        _
      $region16: #{denoising_autoencoder.1} parent=11 // pred_fallthru
        _
      // Predicated region
      $region17: #{denoising_autoencoder.1} parent=11 // pred_check
        %p189 = pneg %p91
      $region18: #{denoising_autoencoder.1} parent=11 // pred_check_branch
        %191 = sbr.rel (%p189) target = $region20
      $region19: #{denoising_autoencoder.1} parent=11 // pred_region
        _
      $region20: #{denoising_autoencoder.1} parent=11 // pred_fallthru
        _
      // Predicated region
      $region21: #{denoising_autoencoder.1} parent=11 // pred_check
        %p192 = pneg %p117
      $region22: #{denoising_autoencoder.1} parent=11 // pred_check_branch
        %194 = sbr.rel (%p192) target = $region24
      $region23: #{denoising_autoencoder.1} parent=11 // pred_region
        %p195 = scmp.lt.s32.totalorder %s21, 0
        %s196 = scalar_select %p195, %s21, 0
        %s197 = smul.addr %s196, 4
        %s198 = scalar_lea.vmem %s3, %s197
      $region24: #{denoising_autoencoder.1} parent=11 // pred_fallthru
        _
      // Predicated region
      $region25: #{denoising_autoencoder.1} parent=11 // pred_check
        %p199 = pneg %p143
      $region26: #{denoising_autoencoder.1} parent=11 // pred_check_branch
        %201 = sbr.rel (%p199) target = $region28
      $region27: #{denoising_autoencoder.1} parent=11 // pred_region
        %p202 = scmp.lt.s32.totalorder %s21, 0
        %s203 = scalar_select %p202, %s21, 0
        %s204 = scalar_lea.vmem %s4, %s203
      $region28: #{denoising_autoencoder.1} parent=11 // pred_fallthru
        _
    $region12: #{denoising_autoencoder.1} parent=5 // pred_fallthru
      _
    %p205 = scmp.lt.s32.totalorder %s11, 2
    // Predicated region
    $region29: #{denoising_autoencoder.1} parent=5 // pred_check
      %p206 = pneg %p205
    $region30: #{denoising_autoencoder.1} parent=5 // pred_check_branch
      %208 = sbr.rel (%p206) target = $region32
    $region31: #{denoising_autoencoder.1} parent=5 // pred_region
      // Predicated region
      $region33: #{denoising_autoencoder.1} parent=31 // pred_check
        %p209 = pneg %p43
      $region34: #{denoising_autoencoder.1} parent=31 // pred_check_branch
        %211 = sbr.rel (%p209) target = $region36
      $region35: #{denoising_autoencoder.1} parent=31 // pred_region
        %s212 = smul.u32 16, %s18
        %p213 = scmp.lt.s32.totalorder %s212, 31
        %s214 = scalar_select %p213, %s212, 31
        %s215 = smul.addr %s214, 4
        %s216 = scalar_lea.vmem %s0, %s215
        %s217 = smul.u32 16, %s18
      $region36: #{denoising_autoencoder.1} parent=31 // pred_fallthru
        _
    $region32: #{denoising_autoencoder.1} parent=5 // pred_fallthru
      _
    %p218 = scmp.le.s32.totalorder 1, %s11
    %p219 = scmp.lt.s32.totalorder %s11, 3
    %p220 = pnand %p218, %p219
    %p221 = pneg %p220
    // Predicated region
    $region37: #{denoising_autoencoder.1} parent=5 // pred_check
      _
    $region38: #{denoising_autoencoder.1} parent=5 // pred_check_branch
      %223 = sbr.rel (%p220) target = $region40
    $region39: #{denoising_autoencoder.1} parent=5 // pred_region
      %s224 = ssub.s32 %s11, 1
      %s225 = smul.u32 16, %s20
      %p226 = scmp.lt.s32.totalorder %s225, 31
      %s227 = scalar_select %p226, %s225, 31
      %s228 = smul.addr %s227, 4
      %s229 = scalar_lea.vmem %s0, %s228
      %p230 = pneg %p49
      %p231 = pneg %p46
      %p232 = pneg %p70
      %p233 = pneg %p67
      %p234 = pneg %p91
      %p235 = pneg %p88
      %p236 = scmp.lt.s32.totalorder %s21, 0
      %s237 = scalar_select %p236, %s21, 0
      %s238 = smul.addr %s237, 4
      %s239 = scalar_lea.vmem %s3, %s238
      %p240 = pneg %p117
      %p241 = pneg %p114
      %p242 = scmp.lt.s32.totalorder %s21, 0
      %s243 = scalar_select %p242, %s21, 0
      %s244 = scalar_lea.vmem %s4, %s243
      %p245 = pneg %p143
      %p246 = pneg %p140
      %p247 = pneg %p171
      %p248 = pneg %p168
      %s249 = smul.u32 16, %s20
      %p250 = scmp.lt.s32.totalorder %s249, 31
      %s251 = scalar_select %p250, %s249, 31
      %p252 = scmp.lt.s32.totalorder %s21, 0
      %s253 = scalar_select %p252, %s21, 0
      %s254 = sadd.s32 %s253, %s251
      %s255 = smul.addr %s254, 8
      %s256 = scalar_lea.vmem %s5, %s255
      %s257 = smul.u32 16, %s20
      %p258 = scmp.lt.s32.totalorder %s257, 31
      %s259 = scalar_select %p258, %s257, 31
      %s260 = smul.addr %s259, 4
      %s261 = scalar_lea.vmem %s0, %s260
      %s262 = smul.u32 16, %s20
      %p263 = scmp.lt.s32.totalorder %s21, 0
      %s264 = scalar_select %p263, %s21, 0
      %s265 = smul.addr %s264, 4
      %s266 = scalar_lea.vmem %s3, %s265
      %p267 = scmp.lt.s32.totalorder %s21, 0
      %s268 = scalar_select %p267, %s21, 0
      %s269 = scalar_lea.vmem %s4, %s268
      %s270 = smul.u32 16, %s20
      %p271 = scmp.lt.s32.totalorder %s270, 31
      %s272 = scalar_select %p271, %s270, 31
      %p273 = scmp.lt.s32.totalorder %s21, 0
      %s274 = scalar_select %p273, %s21, 0
      %s275 = sadd.s32 %s274, %s272
      %s276 = smul.addr %s275, 8
      %s277 = scalar_lea.vmem %s5, %s276
      %s278 = smul.u32 16, %s20
      %p280 = scmp.eq.s32.totalorder %s21, 0
      // Predicated region
      $region41: #{denoising_autoencoder.1} parent=39 // pred_check
        %p281 = pneg %p280
      $region42: #{denoising_autoencoder.1} parent=39 // pred_check_branch
        %283 = sbr.rel (%p281) target = $region44
      $region43: #{denoising_autoencoder.1} parent=39 // pred_region
        %v284 = vld [vmem:[%s261] sm:$0xf]
        %v285 = vld [vmem:[%s261 + $0x4] sm:$0xf]
        %v286 = vld [vmem:[%s261 + $0x8] sm:$0xf]
        %v287 = vld [vmem:[%s261 + $0xc] sm:$0xf]
        %v288 = vld [vmem:[%s261 + $0x10] sm:$0xf]
        %v289 = vld [vmem:[%s261 + $0x14] sm:$0xf]
        %v290 = vld [vmem:[%s261 + $0x18] sm:$0xf]
        %v291 = vld [vmem:[%s261 + $0x1c] sm:$0xf]
        %v292 = vld [vmem:[%s261 + $0x20] sm:$0xf]
        %v293 = vld [vmem:[%s261 + $0x24] sm:$0xf]
        %v294 = vld [vmem:[%s261 + $0x28] sm:$0xf]
        %v295 = vld [vmem:[%s261 + $0x2c] sm:$0xf]
        %v296 = vld [vmem:[%s261 + $0x30] sm:$0xf]
        %v297 = vld [vmem:[%s261 + $0x34] sm:$0xf]
        %v298 = vld [vmem:[%s261 + $0x38] sm:$0xf]
        %v299 = vld [vmem:[%s261 + $0x3c] sm:$0xf]
        %v300 = vld [vmem:[%s1] sm:$0xf]
        %v301 = vld [vmem:[%s1 + $0x4] sm:$0xf]
        %v302 = vld [vmem:[%s1 + $0x8] sm:$0xf]
        %v303 = vld [vmem:[%s1 + $0xc] sm:$0xf]
        %v304 = vld [vmem:[%s1 + $0x10] sm:$0xf]
        %v305 = vld [vmem:[%s1 + $0x14] sm:$0xf]
        %v306 = vld [vmem:[%s1 + $0x18] sm:$0xf]
        %v307 = vld [vmem:[%s1 + $0x1c] sm:$0xf]
        %v308 = vld [vmem:[%s1 + $0x20] sm:$0xf]
        %v309 = vld [vmem:[%s1 + $0x24] sm:$0xf]
        %v310 = vld [vmem:[%s1 + $0x28] sm:$0xf]
        %v311 = vld [vmem:[%s1 + $0x2c] sm:$0xf]
        %v312 = vld [vmem:[%s1 + $0x30] sm:$0xf]
        %v313 = vld [vmem:[%s1 + $0x34] sm:$0xf]
        %v314 = vld [vmem:[%s1 + $0x38] sm:$0xf]
        %v315 = vld [vmem:[%s1 + $0x3c] sm:$0xf]
        %v316 = vld [vmem:[%s2] sm:$0x1]
        %v318 = vlaneseq
        %v319 = vshrl.u32 %v318, 7
        %v320 = vsub.s32 0, %v319
        %v321 = vrot.slane %v316, %v320
        %v339 = vunpack.c.l.b16 %v284
        %v340 = vunpack.c.l.b16 %v285
        %v341 = vunpack.c.l.b16 %v286
        %v342 = vunpack.c.l.b16 %v287
        %v343 = vunpack.c.l.b16 %v288
        %v344 = vunpack.c.l.b16 %v289
        %v345 = vunpack.c.l.b16 %v290
        %v346 = vunpack.c.l.b16 %v291
        %v347 = vunpack.c.l.b16 %v292
        %v348 = vunpack.c.l.b16 %v293
        %v349 = vunpack.c.l.b16 %v294
        %v350 = vunpack.c.l.b16 %v295
        %v351 = vunpack.c.l.b16 %v296
        %v352 = vunpack.c.l.b16 %v297
        %v353 = vunpack.c.l.b16 %v298
        %v354 = vunpack.c.l.b16 %v299
        %v355 = vpack.c.b16 %v340, %v339
        %v356 = vpack.c.b16 %v342, %v341
        %v357 = vpack.c.b16 %v344, %v343
        %v358 = vpack.c.b16 %v346, %v345
        %v359 = vpack.c.b16 %v348, %v347
        %v360 = vpack.c.b16 %v350, %v349
        %v361 = vpack.c.b16 %v352, %v351
        %v362 = vpack.c.b16 %v354, %v353
        %v387 = vunpack.c.l.b16 %v300
        %v388 = vunpack.c.l.b16 %v301
        %v389 = vunpack.c.l.b16 %v302
        %v390 = vunpack.c.l.b16 %v303
        %v391 = vunpack.c.l.b16 %v304
        %v392 = vunpack.c.l.b16 %v305
        %v393 = vunpack.c.l.b16 %v306
        %v394 = vunpack.c.l.b16 %v307
        %v395 = vunpack.c.l.b16 %v308
        %v396 = vunpack.c.l.b16 %v309
        %v397 = vunpack.c.l.b16 %v310
        %v398 = vunpack.c.l.b16 %v311
        %v399 = vunpack.c.l.b16 %v312
        %v400 = vunpack.c.l.b16 %v313
        %v401 = vunpack.c.l.b16 %v314
        %v402 = vunpack.c.l.b16 %v315
        %v403 = vpack.c.b16 %v388, %v387
        %v404 = vpack.c.b16 %v390, %v389
        %v405 = vpack.c.b16 %v392, %v391
        %v406 = vpack.c.b16 %v394, %v393
        %v407 = vpack.c.b16 %v396, %v395
        %v408 = vpack.c.b16 %v398, %v397
        %v409 = vpack.c.b16 %v400, %v399
        %v410 = vpack.c.b16 %v402, %v401
        %419 = vmatprep.subr.bf16.mxu0 0
        %420 = vmatpush1.bf16.msra.mxu0 %v410
        %421 = vmatprep.subr.bf16.mxu0 0
        %422 = vmatpush1.bf16.msra.mxu0 %v409
        %423 = vmatprep.subr.bf16.mxu0 0
        %424 = vmatpush1.bf16.msra.mxu0 %v408
        %425 = vmatprep.subr.bf16.mxu0 0
        %426 = vmatpush1.bf16.msra.mxu0 %v407
        %427 = vmatprep.subr.bf16.mxu0 0
        %428 = vmatpush1.bf16.msra.mxu0 %v406
        %429 = vmatprep.subr.bf16.mxu0 0
        %430 = vmatpush1.bf16.msra.mxu0 %v405
        %431 = vmatprep.subr.bf16.mxu0 0
        %432 = vmatpush1.bf16.msra.mxu0 %v404
        %433 = vmatprep.subr.bf16.mxu0 0
        %434 = vmatpush1.bf16.msra.mxu0 %v403
        %435 = vmatprep.subr.bf16.mxu0 0
        %436 = vmatpush2.bf16.msra.mxu0 0
        %437 = vmatprep.subr.bf16.mxu0 0
        %438 = vmatpush2.bf16.msra.mxu0 0
        %439 = vmatprep.subr.bf16.mxu0 0
        %440 = vmatpush2.bf16.msra.mxu0 0
        %441 = vmatprep.subr.bf16.mxu0 0
        %442 = vmatpush2.bf16.msra.mxu0 0
        %443 = vmatprep.subr.bf16.mxu0 0
        %444 = vmatpush2.bf16.msra.mxu0 0
        %445 = vmatprep.subr.bf16.mxu0 0
        %446 = vmatpush2.bf16.msra.mxu0 0
        %447 = vmatprep.subr.bf16.mxu0 0
        %448 = vmatpush2.bf16.msra.mxu0 0
        %449 = vmatprep.subr.bf16.mxu0 0
        %450 = vmatpush2.bf16.msra.mxu0 0
        %451 = vmatprep.mubr.bf16.mxu0 0
        %452 = vmatmul.mubr.bf16.gmra.mxu0 %v355
        %v453 = vpop.f32.mrf.mxu0
        %v454 = vadd.f32 %v321, %v453
        %v455 = vpop.f32.mrf.mxu0
        %v456 = vpop.f32.mrf.mxu0
        %v457 = vadd.f32 %v321, %v456
        %v458 = vpop.f32.mrf.mxu0
        %459 = vmatprep.mubr.bf16.mxu0 0
        %460 = vmatmul.mubr.bf16.gmra.mxu0 %v356
        %v461 = vpop.f32.mrf.mxu0
        %v462 = vadd.f32 %v321, %v461
        %v463 = vpop.f32.mrf.mxu0
        %v464 = vpop.f32.mrf.mxu0
        %v465 = vadd.f32 %v321, %v464
        %v466 = vpop.f32.mrf.mxu0
        %467 = vmatprep.mubr.bf16.mxu0 0
        %468 = vmatmul.mubr.bf16.gmra.mxu0 %v357
        %v469 = vpop.f32.mrf.mxu0
        %v470 = vadd.f32 %v321, %v469
        %v471 = vpop.f32.mrf.mxu0
        %v472 = vpop.f32.mrf.mxu0
        %v473 = vadd.f32 %v321, %v472
        %v474 = vpop.f32.mrf.mxu0
        %475 = vmatprep.mubr.bf16.mxu0 0
        %476 = vmatmul.mubr.bf16.gmra.mxu0 %v358
        %v477 = vpop.f32.mrf.mxu0
        %v478 = vadd.f32 %v321, %v477
        %v479 = vpop.f32.mrf.mxu0
        %v480 = vpop.f32.mrf.mxu0
        %v481 = vadd.f32 %v321, %v480
        %v482 = vpop.f32.mrf.mxu0
        %483 = vmatprep.mubr.bf16.mxu0 0
        %484 = vmatmul.mubr.bf16.gmra.mxu0 %v359
        %v485 = vpop.f32.mrf.mxu0
        %v486 = vadd.f32 %v321, %v485
        %v487 = vpop.f32.mrf.mxu0
        %v488 = vpop.f32.mrf.mxu0
        %v489 = vadd.f32 %v321, %v488
        %v490 = vpop.f32.mrf.mxu0
        %491 = vmatprep.mubr.bf16.mxu0 0
        %492 = vmatmul.mubr.bf16.gmra.mxu0 %v360
        %v493 = vpop.f32.mrf.mxu0
        %v494 = vadd.f32 %v321, %v493
        %v495 = vpop.f32.mrf.mxu0
        %v496 = vpop.f32.mrf.mxu0
        %v497 = vadd.f32 %v321, %v496
        %v498 = vpop.f32.mrf.mxu0
        %499 = vmatprep.mubr.bf16.mxu0 0
        %500 = vmatmul.mubr.bf16.gmra.mxu0 %v361
        %v501 = vpop.f32.mrf.mxu0
        %v502 = vadd.f32 %v321, %v501
        %v503 = vpop.f32.mrf.mxu0
        %v504 = vpop.f32.mrf.mxu0
        %v505 = vadd.f32 %v321, %v504
        %v506 = vpop.f32.mrf.mxu0
        %507 = vmatprep.mubr.bf16.mxu0 0
        %508 = vmatmul.mubr.bf16.gmra.mxu0 %v362
        %v509 = vpop.f32.mrf.mxu0
        %v510 = vadd.f32 %v321, %v509
        %v511 = vpop.f32.mrf.mxu0
        %v512 = vpop.f32.mrf.mxu0
        %v513 = vadd.f32 %v321, %v512
        %v514 = vpop.f32.mrf.mxu0
        %515 = vdwg.mxu0
        %v516 = vmax.f32 %v454, 0.0
        %v517 = vmax.f32 %v457, 0.0
        %v518 = vmax.f32 %v462, 0.0
        %v519 = vmax.f32 %v465, 0.0
        %v520 = vmax.f32 %v470, 0.0
        %v521 = vmax.f32 %v473, 0.0
        %v522 = vmax.f32 %v478, 0.0
        %v523 = vmax.f32 %v481, 0.0
        %v524 = vmax.f32 %v486, 0.0
        %v525 = vmax.f32 %v489, 0.0
        %v526 = vmax.f32 %v494, 0.0
        %v527 = vmax.f32 %v497, 0.0
        %v528 = vmax.f32 %v502, 0.0
        %v529 = vmax.f32 %v505, 0.0
        %v530 = vmax.f32 %v510, 0.0
        %v531 = vmax.f32 %v513, 0.0
        %v532 = vpack.c.bf16 %v517, %v516
        %v533 = vpack.c.bf16 %v519, %v518
        %v534 = vpack.c.bf16 %v521, %v520
        %v535 = vpack.c.bf16 %v523, %v522
        %v536 = vpack.c.bf16 %v525, %v524
        %v537 = vpack.c.bf16 %v527, %v526
        %v538 = vpack.c.bf16 %v529, %v528
        %v539 = vpack.c.bf16 %v531, %v530
        %v548 = vunpack.c.l.b16 %v532
        %v549 = vunpack.c.h.b16 %v532
        %v550 = vunpack.c.l.b16 %v533
        %v551 = vunpack.c.h.b16 %v533
        %v552 = vunpack.c.l.b16 %v534
        %v553 = vunpack.c.h.b16 %v534
        %v554 = vunpack.c.l.b16 %v535
        %v555 = vunpack.c.h.b16 %v535
        %v556 = vunpack.c.l.b16 %v536
        %v557 = vunpack.c.h.b16 %v536
        %v558 = vunpack.c.l.b16 %v537
        %v559 = vunpack.c.h.b16 %v537
        %v560 = vunpack.c.l.b16 %v538
        %v561 = vunpack.c.h.b16 %v538
        %v562 = vunpack.c.l.b16 %v539
        %v563 = vunpack.c.h.b16 %v539
        %v564 = vpack.c.b16 %v548, %v548
        %v565 = vpack.c.b16 %v549, %v549
        %v566 = vpack.c.b16 %v550, %v550
        %v567 = vpack.c.b16 %v551, %v551
        %v568 = vpack.c.b16 %v552, %v552
        %v569 = vpack.c.b16 %v553, %v553
        %v570 = vpack.c.b16 %v554, %v554
        %v571 = vpack.c.b16 %v555, %v555
        %v572 = vpack.c.b16 %v556, %v556
        %v573 = vpack.c.b16 %v557, %v557
        %v574 = vpack.c.b16 %v558, %v558
        %v575 = vpack.c.b16 %v559, %v559
        %v576 = vpack.c.b16 %v560, %v560
        %v577 = vpack.c.b16 %v561, %v561
        %v578 = vpack.c.b16 %v562, %v562
        %v579 = vpack.c.b16 %v563, %v563
        %596 = vst [vmem:[#allocation2] sm:$0xf] %v564
        %597 = vst [vmem:[#allocation2 + $0x4] sm:$0xf] %v565
        %598 = vst [vmem:[#allocation2 + $0x8] sm:$0xf] %v566
        %599 = vst [vmem:[#allocation2 + $0xc] sm:$0xf] %v567
        %600 = vst [vmem:[#allocation2 + $0x10] sm:$0xf] %v568
        %601 = vst [vmem:[#allocation2 + $0x14] sm:$0xf] %v569
        %602 = vst [vmem:[#allocation2 + $0x18] sm:$0xf] %v570
        %603 = vst [vmem:[#allocation2 + $0x1c] sm:$0xf] %v571
        %604 = vst [vmem:[#allocation2 + $0x20] sm:$0xf] %v572
        %605 = vst [vmem:[#allocation2 + $0x24] sm:$0xf] %v573
        %606 = vst [vmem:[#allocation2 + $0x28] sm:$0xf] %v574
        %607 = vst [vmem:[#allocation2 + $0x2c] sm:$0xf] %v575
        %608 = vst [vmem:[#allocation2 + $0x30] sm:$0xf] %v576
        %609 = vst [vmem:[#allocation2 + $0x34] sm:$0xf] %v577
        %610 = vst [vmem:[#allocation2 + $0x38] sm:$0xf] %v578
        %611 = vst [vmem:[#allocation2 + $0x3c] sm:$0xf] %v579
      $region44: #{denoising_autoencoder.1} parent=39 // pred_fallthru
        _
      %v612 = vld [vmem:[#allocation2] sm:$0xf]
      %v613 = vld [vmem:[#allocation2 + $0x4] sm:$0xf]
      %v614 = vld [vmem:[#allocation2 + $0x8] sm:$0xf]
      %v615 = vld [vmem:[#allocation2 + $0xc] sm:$0xf]
      %v616 = vld [vmem:[#allocation2 + $0x10] sm:$0xf]
      %v617 = vld [vmem:[#allocation2 + $0x14] sm:$0xf]
      %v618 = vld [vmem:[#allocation2 + $0x18] sm:$0xf]
      %v619 = vld [vmem:[#allocation2 + $0x1c] sm:$0xf]
      %v620 = vld [vmem:[#allocation2 + $0x20] sm:$0xf]
      %v621 = vld [vmem:[#allocation2 + $0x24] sm:$0xf]
      %v622 = vld [vmem:[#allocation2 + $0x28] sm:$0xf]
      %v623 = vld [vmem:[#allocation2 + $0x2c] sm:$0xf]
      %v624 = vld [vmem:[#allocation2 + $0x30] sm:$0xf]
      %v625 = vld [vmem:[#allocation2 + $0x34] sm:$0xf]
      %v626 = vld [vmem:[#allocation2 + $0x38] sm:$0xf]
      %v627 = vld [vmem:[#allocation2 + $0x3c] sm:$0xf]
      %v628 = vld [vmem:[%s266] sm:$0xf]
      %v629 = vld [vmem:[%s266 + $0x4] sm:$0xf]
      %v630 = vld [vmem:[%s266 + $0x8] sm:$0xf]
      %v631 = vld [vmem:[%s266 + $0xc] sm:$0xf]
      %v632 = vld [vmem:[%s266 + $0x10] sm:$0xf]
      %v633 = vld [vmem:[%s266 + $0x14] sm:$0xf]
      %v634 = vld [vmem:[%s266 + $0x18] sm:$0xf]
      %v635 = vld [vmem:[%s266 + $0x1c] sm:$0xf]
      %v636 = vld [vmem:[%s266 + $0x20] sm:$0xf]
      %v637 = vld [vmem:[%s266 + $0x24] sm:$0xf]
      %v638 = vld [vmem:[%s266 + $0x28] sm:$0xf]
      %v639 = vld [vmem:[%s266 + $0x2c] sm:$0xf]
      %v640 = vld [vmem:[%s266 + $0x30] sm:$0xf]
      %v641 = vld [vmem:[%s266 + $0x34] sm:$0xf]
      %v642 = vld [vmem:[%s266 + $0x38] sm:$0xf]
      %v643 = vld [vmem:[%s266 + $0x3c] sm:$0xf]
      %v644 = vld [vmem:[%s269] sm:$0x1]
      %v646 = vlaneseq
      %v647 = vshrl.u32 %v646, 7
      %v648 = vsub.s32 0, %v647
      %v649 = vrot.slane %v644, %v648
      %v667 = vunpack.c.l.b16 %v612
      %v668 = vunpack.c.l.b16 %v613
      %v669 = vunpack.c.l.b16 %v614
      %v670 = vunpack.c.l.b16 %v615
      %v671 = vunpack.c.l.b16 %v616
      %v672 = vunpack.c.l.b16 %v617
      %v673 = vunpack.c.l.b16 %v618
      %v674 = vunpack.c.l.b16 %v619
      %v675 = vunpack.c.l.b16 %v620
      %v676 = vunpack.c.l.b16 %v621
      %v677 = vunpack.c.l.b16 %v622
      %v678 = vunpack.c.l.b16 %v623
      %v679 = vunpack.c.l.b16 %v624
      %v680 = vunpack.c.l.b16 %v625
      %v681 = vunpack.c.l.b16 %v626
      %v682 = vunpack.c.l.b16 %v627
      %v683 = vpack.c.b16 %v668, %v667
      %v684 = vpack.c.b16 %v670, %v669
      %v685 = vpack.c.b16 %v672, %v671
      %v686 = vpack.c.b16 %v674, %v673
      %v687 = vpack.c.b16 %v676, %v675
      %v688 = vpack.c.b16 %v678, %v677
      %v689 = vpack.c.b16 %v680, %v679
      %v690 = vpack.c.b16 %v682, %v681
      %v715 = vunpack.c.l.b16 %v628
      %v716 = vunpack.c.l.b16 %v629
      %v717 = vunpack.c.l.b16 %v630
      %v718 = vunpack.c.l.b16 %v631
      %v719 = vunpack.c.l.b16 %v632
      %v720 = vunpack.c.l.b16 %v633
      %v721 = vunpack.c.l.b16 %v634
      %v722 = vunpack.c.l.b16 %v635
      %v723 = vunpack.c.l.b16 %v636
      %v724 = vunpack.c.l.b16 %v637
      %v725 = vunpack.c.l.b16 %v638
      %v726 = vunpack.c.l.b16 %v639
      %v727 = vunpack.c.l.b16 %v640
      %v728 = vunpack.c.l.b16 %v641
      %v729 = vunpack.c.l.b16 %v642
      %v730 = vunpack.c.l.b16 %v643
      %v731 = vpack.c.b16 %v716, %v715
      %v732 = vpack.c.b16 %v718, %v717
      %v733 = vpack.c.b16 %v720, %v719
      %v734 = vpack.c.b16 %v722, %v721
      %v735 = vpack.c.b16 %v724, %v723
      %v736 = vpack.c.b16 %v726, %v725
      %v737 = vpack.c.b16 %v728, %v727
      %v738 = vpack.c.b16 %v730, %v729
      %747 = vmatprep.subr.bf16.mxu0 0
      %748 = vmatpush1.bf16.msra.mxu0 %v738
      %749 = vmatprep.subr.bf16.mxu0 0
      %750 = vmatpush1.bf16.msra.mxu0 %v737
      %751 = vmatprep.subr.bf16.mxu0 0
      %752 = vmatpush1.bf16.msra.mxu0 %v736
      %753 = vmatprep.subr.bf16.mxu0 0
      %754 = vmatpush1.bf16.msra.mxu0 %v735
      %755 = vmatprep.subr.bf16.mxu0 0
      %756 = vmatpush1.bf16.msra.mxu0 %v734
      %757 = vmatprep.subr.bf16.mxu0 0
      %758 = vmatpush1.bf16.msra.mxu0 %v733
      %759 = vmatprep.subr.bf16.mxu0 0
      %760 = vmatpush1.bf16.msra.mxu0 %v732
      %761 = vmatprep.subr.bf16.mxu0 0
      %762 = vmatpush1.bf16.msra.mxu0 %v731
      %763 = vmatprep.subr.bf16.mxu0 0
      %764 = vmatpush2.bf16.msra.mxu0 0
      %765 = vmatprep.subr.bf16.mxu0 0
      %766 = vmatpush2.bf16.msra.mxu0 0
      %767 = vmatprep.subr.bf16.mxu0 0
      %768 = vmatpush2.bf16.msra.mxu0 0
      %769 = vmatprep.subr.bf16.mxu0 0
      %770 = vmatpush2.bf16.msra.mxu0 0
      %771 = vmatprep.subr.bf16.mxu0 0
      %772 = vmatpush2.bf16.msra.mxu0 0
      %773 = vmatprep.subr.bf16.mxu0 0
      %774 = vmatpush2.bf16.msra.mxu0 0
      %775 = vmatprep.subr.bf16.mxu0 0
      %776 = vmatpush2.bf16.msra.mxu0 0
      %777 = vmatprep.subr.bf16.mxu0 0
      %778 = vmatpush2.bf16.msra.mxu0 0
      %779 = vmatprep.mubr.bf16.mxu0 0
      %780 = vmatmul.mubr.bf16.gmra.mxu0 %v683
      %v781 = vpop.f32.mrf.mxu0
      %v782 = vadd.f32 %v649, %v781
      %v783 = vpop.f32.mrf.mxu0
      %v784 = vpop.f32.mrf.mxu0
      %v785 = vadd.f32 %v649, %v784
      %v786 = vpop.f32.mrf.mxu0
      %787 = vmatprep.mubr.bf16.mxu0 0
      %788 = vmatmul.mubr.bf16.gmra.mxu0 %v684
      %v789 = vpop.f32.mrf.mxu0
      %v790 = vadd.f32 %v649, %v789
      %v791 = vpop.f32.mrf.mxu0
      %v792 = vpop.f32.mrf.mxu0
      %v793 = vadd.f32 %v649, %v792
      %v794 = vpop.f32.mrf.mxu0
      %795 = vmatprep.mubr.bf16.mxu0 0
      %796 = vmatmul.mubr.bf16.gmra.mxu0 %v685
      %v797 = vpop.f32.mrf.mxu0
      %v798 = vadd.f32 %v649, %v797
      %v799 = vpop.f32.mrf.mxu0
      %v800 = vpop.f32.mrf.mxu0
      %v801 = vadd.f32 %v649, %v800
      %v802 = vpop.f32.mrf.mxu0
      %803 = vmatprep.mubr.bf16.mxu0 0
      %804 = vmatmul.mubr.bf16.gmra.mxu0 %v686
      %v805 = vpop.f32.mrf.mxu0
      %v806 = vadd.f32 %v649, %v805
      %v807 = vpop.f32.mrf.mxu0
      %v808 = vpop.f32.mrf.mxu0
      %v809 = vadd.f32 %v649, %v808
      %v810 = vpop.f32.mrf.mxu0
      %811 = vmatprep.mubr.bf16.mxu0 0
      %812 = vmatmul.mubr.bf16.gmra.mxu0 %v687
      %v813 = vpop.f32.mrf.mxu0
      %v814 = vadd.f32 %v649, %v813
      %v815 = vpop.f32.mrf.mxu0
      %v816 = vpop.f32.mrf.mxu0
      %v817 = vadd.f32 %v649, %v816
      %v818 = vpop.f32.mrf.mxu0
      %819 = vmatprep.mubr.bf16.mxu0 0
      %820 = vmatmul.mubr.bf16.gmra.mxu0 %v688
      %v821 = vpop.f32.mrf.mxu0
      %v822 = vadd.f32 %v649, %v821
      %v823 = vpop.f32.mrf.mxu0
      %v824 = vpop.f32.mrf.mxu0
      %v825 = vadd.f32 %v649, %v824
      %v826 = vpop.f32.mrf.mxu0
      %827 = vmatprep.mubr.bf16.mxu0 0
      %828 = vmatmul.mubr.bf16.gmra.mxu0 %v689
      %v829 = vpop.f32.mrf.mxu0
      %v830 = vadd.f32 %v649, %v829
      %v831 = vpop.f32.mrf.mxu0
      %v832 = vpop.f32.mrf.mxu0
      %v833 = vadd.f32 %v649, %v832
      %v834 = vpop.f32.mrf.mxu0
      %835 = vmatprep.mubr.bf16.mxu0 0
      %836 = vmatmul.mubr.bf16.gmra.mxu0 %v690
      %v837 = vpop.f32.mrf.mxu0
      %v838 = vadd.f32 %v649, %v837
      %v839 = vpop.f32.mrf.mxu0
      %v840 = vpop.f32.mrf.mxu0
      %v841 = vadd.f32 %v649, %v840
      %v842 = vpop.f32.mrf.mxu0
      %843 = vdwg.mxu0
      %v844 = vmul.f32 %v782, 0.5
      %v845 = vmul.f32 %v785, 0.5
      %v846 = vmul.f32 %v790, 0.5
      %v847 = vmul.f32 %v793, 0.5
      %v848 = vmul.f32 %v798, 0.5
      %v849 = vmul.f32 %v801, 0.5
      %v850 = vmul.f32 %v806, 0.5
      %v851 = vmul.f32 %v809, 0.5
      %v852 = vmul.f32 %v814, 0.5
      %v853 = vmul.f32 %v817, 0.5
      %v854 = vmul.f32 %v822, 0.5
      %v855 = vmul.f32 %v825, 0.5
      %v856 = vmul.f32 %v830, 0.5
      %v857 = vmul.f32 %v833, 0.5
      %v858 = vmul.f32 %v838, 0.5
      %v859 = vmul.f32 %v841, 0.5
      %v860 = vtanh.pop %v844
      %v861 = vtanh.pop %v845
      %v862 = vtanh.pop %v846
      %v863 = vtanh.pop %v847
      %v864 = vtanh.pop %v848
      %v865 = vtanh.pop %v849
      %v866 = vtanh.pop %v850
      %v867 = vtanh.pop %v851
      %v868 = vtanh.pop %v852
      %v869 = vtanh.pop %v853
      %v870 = vtanh.pop %v854
      %v871 = vtanh.pop %v855
      %v872 = vtanh.pop %v856
      %v873 = vtanh.pop %v857
      %v874 = vtanh.pop %v858
      %v875 = vtanh.pop %v859
      %v876 = vmul.f32 %v860, 0.5
      %v877 = vmul.f32 %v861, 0.5
      %v878 = vmul.f32 %v862, 0.5
      %v879 = vmul.f32 %v863, 0.5
      %v880 = vmul.f32 %v864, 0.5
      %v881 = vmul.f32 %v865, 0.5
      %v882 = vmul.f32 %v866, 0.5
      %v883 = vmul.f32 %v867, 0.5
      %v884 = vmul.f32 %v868, 0.5
      %v885 = vmul.f32 %v869, 0.5
      %v886 = vmul.f32 %v870, 0.5
      %v887 = vmul.f32 %v871, 0.5
      %v888 = vmul.f32 %v872, 0.5
      %v889 = vmul.f32 %v873, 0.5
      %v890 = vmul.f32 %v874, 0.5
      %v891 = vmul.f32 %v875, 0.5
      %v892 = vadd.f32 %v876, 0.5
      %v893 = vadd.f32 %v877, 0.5
      %v894 = vadd.f32 %v878, 0.5
      %v895 = vadd.f32 %v879, 0.5
      %v896 = vadd.f32 %v880, 0.5
      %v897 = vadd.f32 %v881, 0.5
      %v898 = vadd.f32 %v882, 0.5
      %v899 = vadd.f32 %v883, 0.5
      %v900 = vadd.f32 %v884, 0.5
      %v901 = vadd.f32 %v885, 0.5
      %v902 = vadd.f32 %v886, 0.5
      %v903 = vadd.f32 %v887, 0.5
      %v904 = vadd.f32 %v888, 0.5
      %v905 = vadd.f32 %v889, 0.5
      %v906 = vadd.f32 %v890, 0.5
      %v907 = vadd.f32 %v891, 0.5
      %908 = vst [vmem:[%s277] sm:$0xff] %v892
      %909 = vst [vmem:[%s277 + $0x8] sm:$0xff] %v893
      %910 = vst [vmem:[%s277 + $0x10] sm:$0xff] %v894
      %911 = vst [vmem:[%s277 + $0x18] sm:$0xff] %v895
      %912 = vst [vmem:[%s277 + $0x20] sm:$0xff] %v896
      %913 = vst [vmem:[%s277 + $0x28] sm:$0xff] %v897
      %914 = vst [vmem:[%s277 + $0x30] sm:$0xff] %v898
      %915 = vst [vmem:[%s277 + $0x38] sm:$0xff] %v899
      %916 = vst [vmem:[%s277 + $0x40] sm:$0xff] %v900
      %917 = vst [vmem:[%s277 + $0x48] sm:$0xff] %v901
      %918 = vst [vmem:[%s277 + $0x50] sm:$0xff] %v902
      %919 = vst [vmem:[%s277 + $0x58] sm:$0xff] %v903
      %920 = vst [vmem:[%s277 + $0x60] sm:$0xff] %v904
      %921 = vst [vmem:[%s277 + $0x68] sm:$0xff] %v905
      %922 = vst [vmem:[%s277 + $0x70] sm:$0xff] %v906
      %923 = vst [vmem:[%s277 + $0x78] sm:$0xff] %v907
      %s924 = smul.u32 16, %s20
      %p925 = scmp.lt.s32.totalorder %s924, 31
      %s926 = scalar_select %p925, %s924, 31
      %p927 = scmp.lt.s32.totalorder %s21, 0
      %s928 = scalar_select %p927, %s21, 0
      %s929 = sadd.s32 %s928, %s926
      %s930 = smul.addr %s929, 8
      %s931 = scalar_lea.vmem %s5, %s930
      // Predicated region
      $region45: #{denoising_autoencoder.1} parent=39 // pred_check
        %p932 = pneg %p168
      $region46: #{denoising_autoencoder.1} parent=39 // pred_check_branch
        %934 = sbr.rel (%p932) target = $region48
      $region47: #{denoising_autoencoder.1} parent=39 // pred_region
        %s935 = smul.u32 16, %s20
      $region48: #{denoising_autoencoder.1} parent=39 // pred_fallthru
        _
    $region40: #{denoising_autoencoder.1} parent=5 // pred_fallthru
      _
    %p936 = scmp.le.s32.totalorder 2, %s11
    // Predicated region
    $region49: #{denoising_autoencoder.1} parent=5 // pred_check
      %p937 = pneg %p936
    $region50: #{denoising_autoencoder.1} parent=5 // pred_check_branch
      %939 = sbr.rel (%p937) target = $region52
    $region51: #{denoising_autoencoder.1} parent=5 // pred_region
      %s940 = ssub.s32 %s11, 2
      // Predicated region
      $region53: #{denoising_autoencoder.1} parent=51 // pred_check
        %p941 = pneg %p174
      $region54: #{denoising_autoencoder.1} parent=51 // pred_check_branch
        %943 = sbr.rel (%p941) target = $region56
      $region55: #{denoising_autoencoder.1} parent=51 // pred_region
        %s944 = smul.u32 16, %s22
        %p945 = scmp.lt.s32.totalorder %s944, 31
        %s946 = scalar_select %p945, %s944, 31
        %p947 = scmp.lt.s32.totalorder %s23, 0
        %s948 = scalar_select %p947, %s23, 0
        %s949 = sadd.s32 %s948, %s946
        %s950 = smul.addr %s949, 8
        %s951 = scalar_lea.vmem %s5, %s950
      $region56: #{denoising_autoencoder.1} parent=51 // pred_fallthru
        _
    $region52: #{denoising_autoencoder.1} parent=5 // pred_fallthru
      _
  $region6: #{denoising_autoencoder.1} parent=0 // loop_footer
    %s15 = sadd.s32 1, %s11
  $region7: #{denoising_autoencoder.1} parent=0 // loop_footer_branch
    %10 = sbr.rel target = $region3
  $region8: #{denoising_autoencoder.1} parent=0 // loop_exit
    _

</llo_original>
